<compile_context>
chip_gen: v5e
topology: v5e:2x2
jax: 0.10.0
libtpu: 0.0.40
codegen_flags: <defaults>
</compile_context>

<pallas_src>
import functools

import jax
import jax.numpy as jnp
import numpy as np
from jax.experimental import pallas as pl
from jax.experimental.pallas import tpu as pltpu


def _round_up(x: int, m: int) -> int:
    return (x + m - 1) // m * m


def _tensorcores_per_device() -> int:
    """Best-effort TensorCore count of the local device (v7x: 2, v5e/v6e: 1)."""
    try:
        kind = jax.devices()[0].device_kind.lower()
    except Exception:
        return 1
    return 2 if "v7" in kind else 1


def entity_attention_kernel(agent_ref, vis_ref, w_ref, b_ref, out_ref, *,
                            num_visible: int, obs_dim: int, approx_recip: bool):
    """One grid step processes a tile of TN rows (row = one (batch, entity)).

    agent_ref : (TN, D)       agent observations, original dtype (MXU cast in-kernel)
    vis_ref   : (TN, V*D)     visible observations, flattened -> dense sublane/lane block
    w_ref     : (D, D)        fused projection weight  W = Wpsi^T @ Wphi^T
    b_ref     : (1, D)  f32   fused projection bias    b = b_psi @ Wphi^T + b_phi
    out_ref   : (TN, V_OUT) f32  softmax weights; lanes [0, V) valid, rest exactly 0
    """
    tn, v_out = out_ref.shape

    # Fused projection: a single MXU pass with f32 accumulation.  Only this
    # operand is cast (to the weight dtype, e.g. bf16); the dominant visible
    # stream never goes through an extra HBM cast pass.
    proj = jnp.dot(agent_ref[...].astype(w_ref.dtype), w_ref[...],
                   preferred_element_type=jnp.float32) + b_ref[...]      # (TN, D) f32

    # beta_v[n] = <proj[n,:], vis[n,v,:]>.  Multiply in the visible stream's
    # dtype (bf16 VPU on v6e/v7x when fed bf16 upstream), accumulate in f32.
    proj_mul = proj.astype(vis_ref.dtype)
    beta_cols = []
    for v in range(num_visible):                          # V is small & static
        vis_v = vis_ref[:, v * obs_dim:(v + 1) * obs_dim]                # (TN, D)
        prod = (proj_mul * vis_v).astype(jnp.float32)
        beta_cols.append(jnp.sum(prod, axis=-1, keepdims=True))          # (TN, 1)

    # Softmax over the V columns using narrow (TN,1) math (no 128-lane slab).
    m = beta_cols[0]
    for v in range(1, num_visible):
        m = jnp.maximum(m, beta_cols[v])
    e_cols = [jnp.exp(c - m) for c in beta_cols]
    denom = e_cols[0]
    for v in range(1, num_visible):
        denom = denom + e_cols[v]
    inv = pl.reciprocal(denom, approx=approx_recip)                      # EUP slot

    # Assemble the narrow lane-padded output tile (padding lanes stay 0).
    lane = jax.lax.broadcasted_iota(jnp.int32, (tn, v_out), 1)
    alpha = jnp.zeros((tn, v_out), jnp.float32)
    for v in range(num_visible):
        alpha = jnp.where(lane == v, e_cols[v] * inv, alpha)
    out_ref[...] = alpha.astype(out_ref.dtype)


def fuse_entity_attention_params(w_psi, b_psi, w_phi, b_phi,
                                 compute_dtype=jnp.bfloat16):
    """Fold the two Linear layers (no nonlinearity between them in the module)
    into one (D, D) projection.  Call once per parameter set (hoisted out of
    the forward pass):   proj = x @ (Wpsi^T @ Wphi^T) + (b_psi @ Wphi^T + b_phi)

    w_psi: (A, D), b_psi: (A,), w_phi: (D, A), b_phi: (D,)  (PyTorch Linear layout).
    """
    hi = jax.lax.Precision.HIGHEST
    A, D = w_psi.shape
    wpsi_t = jnp.asarray(w_psi, jnp.float32).T                 # (D, A)
    wphi_t = jnp.asarray(w_phi, jnp.float32).T                 # (A, D)
    w_fused = jnp.dot(wpsi_t, wphi_t, precision=hi).astype(compute_dtype)   # (D, D)
    b_fused = (jnp.dot(jnp.asarray(b_psi, jnp.float32).reshape(1, A), wphi_t,
                       precision=hi)
               + jnp.asarray(b_phi, jnp.float32).reshape(1, D))             # (1, D) f32
    return w_fused, b_fused


@functools.partial(jax.jit, static_argnames=("tile_n", "approx_recip"))
def entity_attention_fused(agent_obs, visible_obs, w_fused, b_fused, *,
                           tile_n=512, approx_recip=True):
    """agent_obs: (B, E, 1, D); visible_obs: (B, E, V, D) -> alphas (B, E, V), f32."""
    B, E, one, D = agent_obs.shape
    assert one == 1, "kernel implements the documented agent axis == 1 case"
    V = visible_obs.shape[2]
    N = B * E
    v_out = _round_up(V, 8)            # narrow lane-padded output (32 B/row for V<=8)

    # Free row-major collapses: no dtype cast, no copy of the dominant tensors.
    agent2d = agent_obs.reshape(N, D)
    vis2d = visible_obs.reshape(N, V * D)

    n_rows = N
    if n_rows < 8:                     # tiny problems: pad to one sublane tile
        pad = 8 - n_rows
        agent2d = jnp.pad(agent2d, ((0, pad), (0, 0)))
        vis2d = jnp.pad(vis2d, ((0, pad), (0, 0)))
        n_rows = 8

    # Row tiling: largest multiple-of-8 tile <= tile_n; the ragged tail is
    # handled by the cdiv grid (OOB reads masked, OOB writes dropped) instead
    # of a full-array jnp.pad.  Split a lone tile only on chips with 2 TCs
    # (v7x) so both get work via the "parallel" grid axis.
    tn = max(8, (min(tile_n, n_rows) // 8) * 8)
    if (_tensorcores_per_device() >= 2 and pl.cdiv(n_rows, tn) == 1
            and n_rows >= 16):
        tn = max(8, _round_up(pl.cdiv(n_rows, 2), 8))
    grid = (pl.cdiv(n_rows, tn),)

    kernel = functools.partial(entity_attention_kernel, num_visible=V,
                               obs_dim=D, approx_recip=approx_recip)

    cost = pl.CostEstimate(
        flops=2 * n_rows * D * D + 2 * n_rows * V * D,
        transcendentals=n_rows * V,
        bytes_accessed=(agent2d.size * agent2d.dtype.itemsize
                        + vis2d.size * vis2d.dtype.itemsize
                        + w_fused.size * w_fused.dtype.itemsize
                        + b_fused.size * b_fused.dtype.itemsize
                        + n_rows * v_out * 4),
    )

    out = pl.pallas_call(
        kernel,
        out_shape=jax.ShapeDtypeStruct((n_rows, v_out), jnp.float32),
        grid=grid,
        in_specs=[
            pl.BlockSpec((tn, D), lambda i: (i, 0)),        # agent rows
            # TODO(synk): if xprof shows exposed DMA after the tile-size bump,
            # add pipeline_mode=pl.Buffered(3) to this dominant input stream.
            pl.BlockSpec((tn, V * D), lambda i: (i, 0)),    # visible rows (flattened)
            pl.BlockSpec((D, D), lambda i: (0, 0)),         # fused weight (VMEM-resident)
            pl.BlockSpec((1, D), lambda i: (0, 0)),         # fused bias
        ],
        out_specs=pl.BlockSpec((tn, v_out), lambda i: (i, 0)),
        compiler_params=pltpu.CompilerParams(
            dimension_semantics=("parallel",)),
        cost_estimate=cost,
        # Per-step double-buffered VMEM at tn=512 (f32 inputs) is ~4.8 MiB,
        # well under the scoped default on v5e/v6e/v7x -> no explicit limit.
    )(agent2d, vis2d, w_fused, b_fused)

    return out[:N, :V].reshape(B, E, V)


def entity_attention(agent_obs, visible_obs, w_psi, b_psi, w_phi, b_phi, *,
                     tile_n=512, compute_dtype=jnp.bfloat16, approx_recip=True):
    """One-shot convenience wrapper (fuses params per call; prefer hoisting
    fuse_entity_attention_params() when parameters are reused across calls)."""
    w_fused, b_fused = fuse_entity_attention_params(w_psi, b_psi, w_phi, b_phi,
                                                    compute_dtype)
    return entity_attention_fused(agent_obs, visible_obs, w_fused, b_fused,
                                  tile_n=tile_n, approx_recip=approx_recip)


def entity_attention_reference(agent_obs, visible_obs, w_psi, b_psi, w_phi, b_phi):
    """Plain-JAX f32 reference mirroring the PyTorch module."""
    hi = jax.lax.Precision.HIGHEST
    h = jnp.einsum("beod,ad->beoa", agent_obs, w_psi, precision=hi) + b_psi
    proj = jnp.einsum("beoa,da->beod", h, w_phi, precision=hi) + b_phi
    betas = jnp.einsum("beod,bevd->bev", proj, visible_obs, precision=hi)
    return jax.nn.softmax(betas, axis=-1)


if __name__ == "__main__":
    # Small shapes consistent with the module's example usage.
    B, E, V = 2, 5, 3          # batch, entities, visible agents
    D, A = 256, 128            # observation_dim, attention_dim

    key = jax.random.PRNGKey(0)
    k1, k2, k3, k4, k5, k6 = jax.random.split(key, 6)

    agent_obs = jax.random.normal(k1, (B, E, 1, D), jnp.float32)
    visible_obs = jax.random.normal(k2, (B, E, V, D), jnp.float32)

    # Deterministic parameter init (PyTorch nn.Linear layout: (out, in)).
    lim_psi = 1.0 / np.sqrt(D)
    lim_phi = 1.0 / np.sqrt(A)
    w_psi = jax.random.uniform(k3, (A, D), jnp.float32, -lim_psi, lim_psi)
    b_psi = jax.random.uniform(k4, (A,), jnp.float32, -lim_psi, lim_psi)
    w_phi = jax.random.uniform(k5, (D, A), jnp.float32, -lim_phi, lim_phi)
    b_phi = jax.random.uniform(k6, (D,), jnp.float32, -lim_phi, lim_phi)

    ref = entity_attention_reference(agent_obs, visible_obs, w_psi, b_psi, w_phi, b_phi)
    ref = np.asarray(jax.block_until_ready(ref))

    # 1) Exact-math config (f32 fused weight, exact reciprocal): strict check.
    wf32, bfs32 = fuse_entity_attention_params(w_psi, b_psi, w_phi, b_phi, jnp.float32)
    alphas_f32 = entity_attention_fused(agent_obs, visible_obs, wf32, bfs32,
                                        approx_recip=False)
    alphas_f32 = np.asarray(jax.block_until_ready(alphas_f32))
    assert alphas_f32.shape == (B, E, V)
    np.testing.assert_allclose(alphas_f32, ref, rtol=5e-4, atol=1e-5)

    # 2) Default performance config: params fused & cast to bf16 ONCE (hoisted
    #    out of the forward), approx reciprocal in the softmax.
    w_fused, b_fused = fuse_entity_attention_params(w_psi, b_psi, w_phi, b_phi)
    w_fused, b_fused = jax.block_until_ready((w_fused, b_fused))
    alphas = entity_attention_fused(agent_obs, visible_obs, w_fused, b_fused)
    alphas = np.asarray(jax.block_until_ready(alphas))
    assert alphas.shape == (B, E, V)
    np.testing.assert_allclose(alphas, ref, rtol=5e-2, atol=3e-2)

    print("KERNEL_OK")
</pallas_src>

<mosaic_0001>
module attributes {stable_mosaic.version = 11 : i64} {
  func.func @entity_attention_kernel(%arg0: i32, %arg1: memref<8x256xf32, #tpu.memory_space<vmem>>, %arg2: memref<8x768xf32, #tpu.memory_space<vmem>>, %arg3: memref<256x256xf32, #tpu.memory_space<vmem>>, %arg4: memref<1x256xf32, #tpu.memory_space<vmem>>, %arg5: memref<8x8xf32, #tpu.memory_space<vmem>>) attributes {dimension_semantics = [#tpu.dimension_semantics<parallel>], iteration_bounds = array<i64: 2>, scalar_prefetch = 0 : i64, scratch_operands = 0 : i64, tpu.core_type = #tpu.core_type<tc>, window_params = [{transform_indices = @transform_0, window_bounds = array<i64: 8, 256>}, {transform_indices = @transform_1, window_bounds = array<i64: 8, 768>}, {pipeline_mode = #tpu.pipeline_mode<synchronous>, transform_indices = @transform_2, window_bounds = array<i64: 256, 256>}, {pipeline_mode = #tpu.pipeline_mode<synchronous>, transform_indices = @transform_3, window_bounds = array<i64: 1, 256>}, {transform_indices = @transform_4, window_bounds = array<i64: 8, 8>}]} {
    %c0 = arith.constant 0 : index
    %c0_0 = arith.constant 0 : index
    %0 = vector.load %arg1[%c0, %c0_0] : memref<8x256xf32, #tpu.memory_space<vmem>>, vector<8x256xf32>
    %c0_1 = arith.constant 0 : index
    %c0_2 = arith.constant 0 : index
    %1 = vector.load %arg3[%c0_1, %c0_2] : memref<256x256xf32, #tpu.memory_space<vmem>>, vector<256x256xf32>
    %cst = arith.constant dense<0.000000e+00> : vector<8x256xf32>
    %2 = tpu.matmul %0, %1, %cst {dimension_numbers = #tpu.dot_dimension_numbers<[1], [0], [0], [1], [0, 0, 1, 1], [], []>} : vector<8x256xf32>, vector<256x256xf32>, vector<8x256xf32> -> vector<8x256xf32>
    %c0_3 = arith.constant 0 : index
    %c0_4 = arith.constant 0 : index
    %3 = vector.load %arg4[%c0_3, %c0_4] : memref<1x256xf32, #tpu.memory_space<vmem>>, vector<1x256xf32>
    %4 = vector.broadcast %3 : vector<1x256xf32> to vector<8x256xf32>
    %5 = arith.addf %2, %4 : vector<8x256xf32>
    %c0_5 = arith.constant 0 : index
    %c0_6 = arith.constant 0 : index
    %6 = vector.load %arg2[%c0_5, %c0_6] : memref<8x768xf32, #tpu.memory_space<vmem>>, vector<8x256xf32>
    %7 = arith.mulf %5, %6 : vector<8x256xf32>
    %cst_7 = arith.constant dense<0.000000e+00> : vector<8xf32>
    %8 = vector.multi_reduction <add>, %7, %cst_7 [1] : vector<8x256xf32> to vector<8xf32>
    %9 = vector.shape_cast %8 : vector<8xf32> to vector<8x1xf32>
    %c0_8 = arith.constant 0 : index
    %c256 = arith.constant 256 : index
    %10 = vector.load %arg2[%c0_8, %c256] : memref<8x768xf32, #tpu.memory_space<vmem>>, vector<8x256xf32>
    %11 = arith.mulf %5, %10 : vector<8x256xf32>
    %cst_9 = arith.constant dense<0.000000e+00> : vector<8xf32>
    %12 = vector.multi_reduction <add>, %11, %cst_9 [1] : vector<8x256xf32> to vector<8xf32>
    %13 = vector.shape_cast %12 : vector<8xf32> to vector<8x1xf32>
    %c0_10 = arith.constant 0 : index
    %c512 = arith.constant 512 : index
    %14 = vector.load %arg2[%c0_10, %c512] : memref<8x768xf32, #tpu.memory_space<vmem>>, vector<8x256xf32>
    %15 = arith.mulf %5, %14 : vector<8x256xf32>
    %cst_11 = arith.constant dense<0.000000e+00> : vector<8xf32>
    %16 = vector.multi_reduction <add>, %15, %cst_11 [1] : vector<8x256xf32> to vector<8xf32>
    %17 = vector.shape_cast %16 : vector<8xf32> to vector<8x1xf32>
    %18 = arith.maximumf %9, %13 : vector<8x1xf32>
    %19 = arith.maximumf %18, %17 : vector<8x1xf32>
    %20 = arith.subf %9, %19 : vector<8x1xf32>
    %21 = math.exp %20 : vector<8x1xf32>
    %22 = arith.subf %13, %19 : vector<8x1xf32>
    %23 = math.exp %22 : vector<8x1xf32>
    %24 = arith.subf %17, %19 : vector<8x1xf32>
    %25 = math.exp %24 : vector<8x1xf32>
    %26 = arith.addf %21, %23 : vector<8x1xf32>
    %27 = arith.addf %26, %25 : vector<8x1xf32>
    %28 = tpu.reciprocal %27 : vector<8x1xf32> -> vector<8x1xf32>
    %29 = tpu.iota {dimensions = array<i32: 1>} : vector<8x8xi32>
    %cst_12 = arith.constant 0.000000e+00 : f32
    %30 = vector.broadcast %cst_12 : f32 to vector<8x8xf32>
    %c0_i32 = arith.constant 0 : i32
    %31 = vector.broadcast %c0_i32 : i32 to vector<8x8xi32>
    %32 = arith.cmpi eq, %29, %31 : vector<8x8xi32>
    %33 = arith.mulf %21, %28 : vector<8x1xf32>
    %34 = vector.shape_cast %33 : vector<8x1xf32> to vector<8x1xf32>
    %35 = vector.broadcast %34 : vector<8x1xf32> to vector<8x8xf32>
    %36 = arith.select %32, %35, %30 : vector<8x8xi1>, vector<8x8xf32>
    %c1_i32 = arith.constant 1 : i32
    %37 = vector.broadcast %c1_i32 : i32 to vector<8x8xi32>
    %38 = arith.cmpi eq, %29, %37 : vector<8x8xi32>
    %39 = arith.mulf %23, %28 : vector<8x1xf32>
    %40 = vector.shape_cast %39 : vector<8x1xf32> to vector<8x1xf32>
    %41 = vector.broadcast %40 : vector<8x1xf32> to vector<8x8xf32>
    %42 = arith.select %38, %41, %36 : vector<8x8xi1>, vector<8x8xf32>
    %c2_i32 = arith.constant 2 : i32
    %43 = vector.broadcast %c2_i32 : i32 to vector<8x8xi32>
    %44 = arith.cmpi eq, %29, %43 : vector<8x8xi32>
    %45 = arith.mulf %25, %28 : vector<8x1xf32>
    %46 = vector.shape_cast %45 : vector<8x1xf32> to vector<8x1xf32>
    %47 = vector.broadcast %46 : vector<8x1xf32> to vector<8x8xf32>
    %48 = arith.select %44, %47, %42 : vector<8x8xi1>, vector<8x8xf32>
    %c0_13 = arith.constant 0 : index
    %c0_14 = arith.constant 0 : index
    %49 = vector.load %arg5[%c0_13, %c0_14] : memref<8x8xf32, #tpu.memory_space<vmem>>, vector<8x8xf32>
    tpu.vector_store %arg5[%c0_13, %c0_14], %48 {strides = array<i32>} : memref<8x8xf32, #tpu.memory_space<vmem>>, vector<8x8xf32>,
    return
  }
  func.func @transform_0(%arg0: i32) -> (i32, i32) {
    %c0_i32 = arith.constant 0 : i32
    %c0_i32_0 = arith.constant 0 : i32
    return %arg0, %c0_i32 : i32, i32
  }
  func.func @transform_1(%arg0: i32) -> (i32, i32) {
    %c0_i32 = arith.constant 0 : i32
    %c0_i32_0 = arith.constant 0 : i32
    return %arg0, %c0_i32 : i32, i32
  }
  func.func @transform_2(%arg0: i32) -> (i32, i32) {
    %c0_i32 = arith.constant 0 : i32
    %c0_i32_0 = arith.constant 0 : i32
    %c0_i32_1 = arith.constant 0 : i32
    return %c0_i32, %c0_i32_0 : i32, i32
  }
  func.func @transform_3(%arg0: i32) -> (i32, i32) {
    %c0_i32 = arith.constant 0 : i32
    %c0_i32_0 = arith.constant 0 : i32
    %c0_i32_1 = arith.constant 0 : i32
    return %c0_i32, %c0_i32_0 : i32, i32
  }
  func.func @transform_4(%arg0: i32) -> (i32, i32) {
    %c0_i32 = arith.constant 0 : i32
    %c0_i32_0 = arith.constant 0 : i32
    return %arg0, %c0_i32 : i32, i32
  }
}

</mosaic_0001>

<llo_original>
// kernel: entity_attention_fused.1
$region0: #{entity_attention_fused.1}
  #allocation0 [shape = 'u32[]', space=smem, size = 0x4, offset = 0x4, fixed_abs, tag = 'smem constant byte address 0x4 - core index']
  #allocation1 [shape = 'u32[72,128]{1,0:T(1,128)}', space=vmem, size = 0x9000, scoped, tag = 'internal scratch']
  %s0 = inlined_call_operand.vmem [shape: f32[10,256], index: 0, kind: input, shape index: {}]
  %s1 = inlined_call_operand.vmem [shape: f32[10,768], index: 1, kind: input, shape index: {}]
  %s2 = inlined_call_operand.vmem [shape: f32[256,256], index: 2, kind: input, shape index: {}]
  %s3 = inlined_call_operand.vmem [shape: f32[1,256], index: 3, kind: input, shape index: {}]
  %s4 = inlined_call_operand.vmem [shape: f32[10,8], index: 4, kind: output, shape index: {}]
  %s5 = sld [smem:[#allocation0]]
  $region49: #{entity_attention_fused.1} parent=0
    _
  %s7 = ssub.s32 1, %s5
  %s8 = scalar_select 0, %s7, %s5
  loop: start=0, step=1, limit=4
  $region2: #{entity_attention_fused.1} parent=0 // loop_pre_header
    _
  $region3: #{entity_attention_fused.1} parent=0 // loop_header
    %s10 = sphi 0, %s14
    %p11 = scmp.ge.s32.totalorder %s10, 4
    %s20 = sphi 0, %s22
    %s23 = sphi 0, %s20
    %s24 = sphi 0, %s23
    %s40 = sphi 0, %s24
    %s46 = sphi 0, %s48
    %s49 = sphi 0, %s46
    %s50 = sphi 0, %s49
    %s66 = sphi 0, %s50
    %s70 = sphi 0, %s70
    %s72 = sphi 0, %s70
    %s73 = sphi 0, %s72
    %s87 = sphi 0, %s73
    %s91 = sphi 0, %s91
    %s93 = sphi 0, %s91
    %s94 = sphi 0, %s93
    %s108 = sphi 0, %s94
    %s114 = sphi 0, %s116
    %s117 = sphi 0, %s114
    %s118 = sphi 0, %s117
    %s134 = sphi 0, %s118
  $region4: #{entity_attention_fused.1} parent=0 // loop_header_branch
    %13 = sbr.rel (%p11) target = $region8
  $region5: #{entity_attention_fused.1} parent=0 // loop_body
    %s15 = ssub.s32 %s10, 1
    %s16 = ssub.s32 %s10, 2
    %s17 = sadd.s32 %s10, 1
    %s18 = ssub.s32 %s10, %s17
    %p19 = scmp.eq.s32.totalorder %s18, 0
    %s21 = sadd.s32 %s20, 1
    %s22 = scalar_select %p19, %s20, %s21
    %p25 = pneg %p19
    %p26 = scmp.eq.s32.totalorder %s10, 1
    %p27 = por %p25, %p26
    %p28 = scmp.ne.s32.totalorder %s20, %s23
    %p29 = scmp.eq.s32.totalorder %s10, 0
    %p30 = por %p28, %p29
    %p31 = scmp.ne.s32.totalorder %s20, %s23
    %p32 = scmp.eq.s32.totalorder %s15, 1
    %p33 = por %p31, %p32
    %p34 = scmp.ne.s32.totalorder %s23, %s24
    %p35 = scmp.eq.s32.totalorder %s15, 0
    %p36 = por %p34, %p35
    %p37 = scmp.ne.s32.totalorder %s23, %s24
    %p38 = scmp.eq.s32.totalorder %s16, 1
    %p39 = por %p37, %p38
    %p41 = scmp.ne.s32.totalorder %s24, %s40
    %p42 = scmp.eq.s32.totalorder %s16, 0
    %p43 = por %p41, %p42
    %s44 = ssub.s32 %s10, %s17
    %p45 = scmp.eq.s32.totalorder %s44, 0
    %s47 = sadd.s32 %s46, 1
    %s48 = scalar_select %p45, %s46, %s47
    %p51 = pneg %p45
    %p52 = scmp.eq.s32.totalorder %s10, 1
    %p53 = por %p51, %p52
    %p54 = scmp.ne.s32.totalorder %s46, %s49
    %p55 = scmp.eq.s32.totalorder %s10, 0
    %p56 = por %p54, %p55
    %p57 = scmp.ne.s32.totalorder %s46, %s49
    %p58 = scmp.eq.s32.totalorder %s15, 1
    %p59 = por %p57, %p58
    %p60 = scmp.ne.s32.totalorder %s49, %s50
    %p61 = scmp.eq.s32.totalorder %s15, 0
    %p62 = por %p60, %p61
    %p63 = scmp.ne.s32.totalorder %s49, %s50
    %p64 = scmp.eq.s32.totalorder %s16, 1
    %p65 = por %p63, %p64
    %p67 = scmp.ne.s32.totalorder %s50, %s66
    %p68 = scmp.eq.s32.totalorder %s16, 0
    %p69 = por %p67, %p68
    %s71 = sadd.s32 %s70, 1
    %p74 = scmp.eq.s32.totalorder %s10, 1
    %p75 = scmp.ne.s32.totalorder %s70, %s72
    %p76 = scmp.eq.s32.totalorder %s10, 0
    %p77 = por %p75, %p76
    %p78 = scmp.ne.s32.totalorder %s70, %s72
    %p79 = scmp.eq.s32.totalorder %s15, 1
    %p80 = por %p78, %p79
    %p81 = scmp.ne.s32.totalorder %s72, %s73
    %p82 = scmp.eq.s32.totalorder %s15, 0
    %p83 = por %p81, %p82
    %p84 = scmp.ne.s32.totalorder %s72, %s73
    %p85 = scmp.eq.s32.totalorder %s16, 1
    %p86 = por %p84, %p85
    %p88 = scmp.ne.s32.totalorder %s73, %s87
    %p89 = scmp.eq.s32.totalorder %s16, 0
    %p90 = por %p88, %p89
    %s92 = sadd.s32 %s91, 1
    %p95 = scmp.eq.s32.totalorder %s10, 1
    %p96 = scmp.ne.s32.totalorder %s91, %s93
    %p97 = scmp.eq.s32.totalorder %s10, 0
    %p98 = por %p96, %p97
    %p99 = scmp.ne.s32.totalorder %s91, %s93
    %p100 = scmp.eq.s32.totalorder %s15, 1
    %p101 = por %p99, %p100
    %p102 = scmp.ne.s32.totalorder %s93, %s94
    %p103 = scmp.eq.s32.totalorder %s15, 0
    %p104 = por %p102, %p103
    %p105 = scmp.ne.s32.totalorder %s93, %s94
    %p106 = scmp.eq.s32.totalorder %s16, 1
    %p107 = por %p105, %p106
    %p109 = scmp.ne.s32.totalorder %s94, %s108
    %p110 = scmp.eq.s32.totalorder %s16, 0
    %p111 = por %p109, %p110
    %s112 = ssub.s32 %s10, %s17
    %p113 = scmp.eq.s32.totalorder %s112, 0
    %s115 = sadd.s32 %s114, 1
    %s116 = scalar_select %p113, %s114, %s115
    %p119 = pneg %p113
    %p120 = scmp.eq.s32.totalorder %s10, 1
    %p121 = por %p119, %p120
    %p122 = scmp.ne.s32.totalorder %s114, %s117
    %p123 = scmp.eq.s32.totalorder %s10, 0
    %p124 = por %p122, %p123
    %p125 = scmp.ne.s32.totalorder %s114, %s117
    %p126 = scmp.eq.s32.totalorder %s15, 1
    %p127 = por %p125, %p126
    %p128 = scmp.ne.s32.totalorder %s117, %s118
    %p129 = scmp.eq.s32.totalorder %s15, 0
    %p130 = por %p128, %p129
    %p131 = scmp.ne.s32.totalorder %s117, %s118
    %p132 = scmp.eq.s32.totalorder %s16, 1
    %p133 = por %p131, %p132
    %p135 = scmp.ne.s32.totalorder %s118, %s134
    %p136 = scmp.eq.s32.totalorder %s16, 0
    %p137 = por %p135, %p136
    %p138 = scmp.le.s32.totalorder 1, %s10
    %p139 = scmp.lt.s32.totalorder %s10, 3
    %p140 = pnand %p138, %p139
    %p141 = pneg %p140
    // Predicated region
    $region9: #{entity_attention_fused.1} parent=5 // pred_check
      _
    $region10: #{entity_attention_fused.1} parent=5 // pred_check_branch
      %143 = sbr.rel (%p140) target = $region12
    $region11: #{entity_attention_fused.1} parent=5 // pred_region
      %s144 = ssub.s32 %s10, 1
      // Predicated region
      $region13: #{entity_attention_fused.1} parent=11 // pred_check
        %p145 = pneg %p83
      $region14: #{entity_attention_fused.1} parent=11 // pred_check_branch
        %147 = sbr.rel (%p145) target = $region16
      $region15: #{entity_attention_fused.1} parent=11 // pred_region
        _
      $region16: #{entity_attention_fused.1} parent=11 // pred_fallthru
        _
      // Predicated region
      $region17: #{entity_attention_fused.1} parent=11 // pred_check
        %p148 = pneg %p104
      $region18: #{entity_attention_fused.1} parent=11 // pred_check_branch
        %150 = sbr.rel (%p148) target = $region20
      $region19: #{entity_attention_fused.1} parent=11 // pred_region
        _
      $region20: #{entity_attention_fused.1} parent=11 // pred_fallthru
        _
    $region12: #{entity_attention_fused.1} parent=5 // pred_fallthru
      _
    %p151 = scmp.lt.s32.totalorder %s10, 2
    // Predicated region
    $region21: #{entity_attention_fused.1} parent=5 // pred_check
      %p152 = pneg %p151
    $region22: #{entity_attention_fused.1} parent=5 // pred_check_branch
      %154 = sbr.rel (%p152) target = $region24
    $region23: #{entity_attention_fused.1} parent=5 // pred_region
      // Predicated region
      $region25: #{entity_attention_fused.1} parent=23 // pred_check
        %p155 = pneg %p30
      $region26: #{entity_attention_fused.1} parent=23 // pred_check_branch
        %157 = sbr.rel (%p155) target = $region28
      $region27: #{entity_attention_fused.1} parent=23 // pred_region
        %p158 = scmp.lt.s32.totalorder %s10, 1
        %s159 = scalar_select %p158, %s10, 1
        %s160 = smul.addr %s159, 2
        %s161 = smul.addr %s160, 8
        %s162 = scalar_lea.vmem %s0, %s161
      $region28: #{entity_attention_fused.1} parent=23 // pred_fallthru
        _
      // Predicated region
      $region29: #{entity_attention_fused.1} parent=23 // pred_check
        %p163 = pneg %p56
      $region30: #{entity_attention_fused.1} parent=23 // pred_check_branch
        %165 = sbr.rel (%p163) target = $region32
      $region31: #{entity_attention_fused.1} parent=23 // pred_region
        %p166 = scmp.lt.s32.totalorder %s10, 1
        %s167 = scalar_select %p166, %s10, 1
        %s168 = smul.addr %s167, 6
        %s169 = smul.addr %s168, 8
        %s170 = scalar_lea.vmem %s1, %s169
      $region32: #{entity_attention_fused.1} parent=23 // pred_fallthru
        _
    $region24: #{entity_attention_fused.1} parent=5 // pred_fallthru
      _
    %p171 = scmp.le.s32.totalorder 1, %s10
    %p172 = scmp.lt.s32.totalorder %s10, 3
    %p173 = pnand %p171, %p172
    %p174 = pneg %p173
    // Predicated region
    $region33: #{entity_attention_fused.1} parent=5 // pred_check
      _
    $region34: #{entity_attention_fused.1} parent=5 // pred_check_branch
      %176 = sbr.rel (%p173) target = $region36
    $region35: #{entity_attention_fused.1} parent=5 // pred_region
      %s177 = ssub.s32 %s10, 1
      %p178 = scmp.lt.s32.totalorder %s15, 1
      %s179 = scalar_select %p178, %s15, 1
      %s180 = smul.addr %s179, 2
      %s181 = smul.addr %s180, 8
      %s182 = scalar_lea.vmem %s0, %s181
      %p183 = pneg %p36
      %p184 = pneg %p33
      %p185 = scmp.lt.s32.totalorder %s15, 1
      %s186 = scalar_select %p185, %s15, 1
      %s187 = smul.addr %s186, 6
      %s188 = smul.addr %s187, 8
      %s189 = scalar_lea.vmem %s1, %s188
      %p190 = pneg %p62
      %p191 = pneg %p59
      %p192 = pneg %p83
      %p193 = pneg %p80
      %p194 = pneg %p104
      %p195 = pneg %p101
      %p196 = pneg %p130
      %p197 = pneg %p127
      %p198 = scmp.lt.s32.totalorder %s15, 1
      %s199 = scalar_select %p198, %s15, 1
      %s200 = smul.addr %s199, 8
      %s201 = scalar_lea.vmem %s4, %s200
      %p202 = scmp.lt.s32.totalorder %s15, 1
      %s203 = scalar_select %p202, %s15, 1
      %s204 = smul.addr %s203, 2
      %s205 = smul.addr %s204, 8
      %s206 = scalar_lea.vmem %s0, %s205
      %p207 = scmp.lt.s32.totalorder %s15, 1
      %s208 = scalar_select %p207, %s15, 1
      %s209 = smul.addr %s208, 6
      %s210 = smul.addr %s209, 8
      %s211 = scalar_lea.vmem %s1, %s210
      %p212 = scmp.lt.s32.totalorder %s15, 1
      %s213 = scalar_select %p212, %s15, 1
      %s214 = smul.addr %s213, 8
      %s215 = scalar_lea.vmem %s4, %s214
      %v216 = vld [vmem:[%s206] sm:$0xff]
      %v217 = vld [vmem:[%s206 + $0x8] sm:$0xff]
      %v218 = vld [vmem:[%s2] sm:$0xff]
      %v219 = vld [vmem:[%s2 + $0x8] sm:$0xff]
      %v220 = vld [vmem:[%s2 + $0x10] sm:$0xff]
      %v221 = vld [vmem:[%s2 + $0x18] sm:$0xff]
      %v222 = vld [vmem:[%s2 + $0x20] sm:$0xff]
      %v223 = vld [vmem:[%s2 + $0x28] sm:$0xff]
      %v224 = vld [vmem:[%s2 + $0x30] sm:$0xff]
      %v225 = vld [vmem:[%s2 + $0x38] sm:$0xff]
      %v226 = vld [vmem:[%s2 + $0x40] sm:$0xff]
      %v227 = vld [vmem:[%s2 + $0x48] sm:$0xff]
      %v228 = vld [vmem:[%s2 + $0x50] sm:$0xff]
      %v229 = vld [vmem:[%s2 + $0x58] sm:$0xff]
      %v230 = vld [vmem:[%s2 + $0x60] sm:$0xff]
      %v231 = vld [vmem:[%s2 + $0x68] sm:$0xff]
      %v232 = vld [vmem:[%s2 + $0x70] sm:$0xff]
      %v233 = vld [vmem:[%s2 + $0x78] sm:$0xff]
      %v234 = vld [vmem:[%s2 + $0x80] sm:$0xff]
      %v235 = vld [vmem:[%s2 + $0x88] sm:$0xff]
      %v236 = vld [vmem:[%s2 + $0x90] sm:$0xff]
      %v237 = vld [vmem:[%s2 + $0x98] sm:$0xff]
      %v238 = vld [vmem:[%s2 + $0xa0] sm:$0xff]
      %v239 = vld [vmem:[%s2 + $0xa8] sm:$0xff]
      %v240 = vld [vmem:[%s2 + $0xb0] sm:$0xff]
      %v241 = vld [vmem:[%s2 + $0xb8] sm:$0xff]
      %v242 = vld [vmem:[%s2 + $0xc0] sm:$0xff]
      %v243 = vld [vmem:[%s2 + $0xc8] sm:$0xff]
      %v244 = vld [vmem:[%s2 + $0xd0] sm:$0xff]
      %v245 = vld [vmem:[%s2 + $0xd8] sm:$0xff]
      %v246 = vld [vmem:[%s2 + $0xe0] sm:$0xff]
      %v247 = vld [vmem:[%s2 + $0xe8] sm:$0xff]
      %v248 = vld [vmem:[%s2 + $0xf0] sm:$0xff]
      %v249 = vld [vmem:[%s2 + $0xf8] sm:$0xff]
      %v250 = vld [vmem:[%s2 + $0x100] sm:$0xff]
      %v251 = vld [vmem:[%s2 + $0x108] sm:$0xff]
      %v252 = vld [vmem:[%s2 + $0x110] sm:$0xff]
      %v253 = vld [vmem:[%s2 + $0x118] sm:$0xff]
      %v254 = vld [vmem:[%s2 + $0x120] sm:$0xff]
      %v255 = vld [vmem:[%s2 + $0x128] sm:$0xff]
      %v256 = vld [vmem:[%s2 + $0x130] sm:$0xff]
      %v257 = vld [vmem:[%s2 + $0x138] sm:$0xff]
      %v258 = vld [vmem:[%s2 + $0x140] sm:$0xff]
      %v259 = vld [vmem:[%s2 + $0x148] sm:$0xff]
      %v260 = vld [vmem:[%s2 + $0x150] sm:$0xff]
      %v261 = vld [vmem:[%s2 + $0x158] sm:$0xff]
      %v262 = vld [vmem:[%s2 + $0x160] sm:$0xff]
      %v263 = vld [vmem:[%s2 + $0x168] sm:$0xff]
      %v264 = vld [vmem:[%s2 + $0x170] sm:$0xff]
      %v265 = vld [vmem:[%s2 + $0x178] sm:$0xff]
      %v266 = vld [vmem:[%s2 + $0x180] sm:$0xff]
      %v267 = vld [vmem:[%s2 + $0x188] sm:$0xff]
      %v268 = vld [vmem:[%s2 + $0x190] sm:$0xff]
      %v269 = vld [vmem:[%s2 + $0x198] sm:$0xff]
      %v270 = vld [vmem:[%s2 + $0x1a0] sm:$0xff]
      %v271 = vld [vmem:[%s2 + $0x1a8] sm:$0xff]
      %v272 = vld [vmem:[%s2 + $0x1b0] sm:$0xff]
      %v273 = vld [vmem:[%s2 + $0x1b8] sm:$0xff]
      %v274 = vld [vmem:[%s2 + $0x1c0] sm:$0xff]
      %v275 = vld [vmem:[%s2 + $0x1c8] sm:$0xff]
      %v276 = vld [vmem:[%s2 + $0x1d0] sm:$0xff]
      %v277 = vld [vmem:[%s2 + $0x1d8] sm:$0xff]
      %v278 = vld [vmem:[%s2 + $0x1e0] sm:$0xff]
      %v279 = vld [vmem:[%s2 + $0x1e8] sm:$0xff]
      %v280 = vld [vmem:[%s2 + $0x1f0] sm:$0xff]
      %v281 = vld [vmem:[%s2 + $0x1f8] sm:$0xff]
      %v282 = vld [vmem:[%s3] sm:$0x3]
      %v284 = vperm.slane %v282, 0
      %v285 = vperm.slane %v282, 1
      %288 = vmatpush.msra.mxu0 %v248
      %289 = vmatpush.msra.mxu0 %v246
      %290 = vmatpush.msra.mxu0 %v244
      %291 = vmatpush.msra.mxu0 %v242
      %292 = vmatpush.msra.mxu0 %v240
      %293 = vmatpush.msra.mxu0 %v238
      %294 = vmatpush.msra.mxu0 %v236
      %295 = vmatpush.msra.mxu0 %v234
      %296 = vmatpush.msra.mxu0 %v232
      %297 = vmatpush.msra.mxu0 %v230
      %298 = vmatpush.msra.mxu0 %v228
      %299 = vmatpush.msra.mxu0 %v226
      %300 = vmatpush.msra.mxu0 %v224
      %301 = vmatpush.msra.mxu0 %v222
      %302 = vmatpush.msra.mxu0 %v220
      %303 = vmatpush.msra.mxu0 %v218
      %304 = vmatmul.f32.gmra.mxu0 %v216
      %v305 = vpop.f32.mrf.mxu0
      %v306 = vadd.f32 %v284, %v305
      %307 = vdwg.mxu0
      %308 = vmatpush.msra.mxu0 %v280
      %309 = vmatpush.msra.mxu0 %v278
      %310 = vmatpush.msra.mxu0 %v276
      %311 = vmatpush.msra.mxu0 %v274
      %312 = vmatpush.msra.mxu0 %v272
      %313 = vmatpush.msra.mxu0 %v270
      %314 = vmatpush.msra.mxu0 %v268
      %315 = vmatpush.msra.mxu0 %v266
      %316 = vmatpush.msra.mxu0 %v264
      %317 = vmatpush.msra.mxu0 %v262
      %318 = vmatpush.msra.mxu0 %v260
      %319 = vmatpush.msra.mxu0 %v258
      %320 = vmatpush.msra.mxu0 %v256
      %321 = vmatpush.msra.mxu0 %v254
      %322 = vmatpush.msra.mxu0 %v252
      %323 = vmatpush.msra.mxu0 %v250
      %324 = vmatmul.f32.gmra.mxu0 %v217
      %v325 = vpop.f32.mrf.mxu0
      %v326 = vadd.f32 %v306, %v325
      %327 = vdwg.mxu0
      %328 = vmatpush.msra.mxu0 %v249
      %329 = vmatpush.msra.mxu0 %v247
      %330 = vmatpush.msra.mxu0 %v245
      %331 = vmatpush.msra.mxu0 %v243
      %332 = vmatpush.msra.mxu0 %v241
      %333 = vmatpush.msra.mxu0 %v239
      %334 = vmatpush.msra.mxu0 %v237
      %335 = vmatpush.msra.mxu0 %v235
      %336 = vmatpush.msra.mxu0 %v233
      %337 = vmatpush.msra.mxu0 %v231
      %338 = vmatpush.msra.mxu0 %v229
      %339 = vmatpush.msra.mxu0 %v227
      %340 = vmatpush.msra.mxu0 %v225
      %341 = vmatpush.msra.mxu0 %v223
      %342 = vmatpush.msra.mxu0 %v221
      %343 = vmatpush.msra.mxu0 %v219
      %344 = vmatmul.f32.gmra.mxu0 %v216
      %v345 = vpop.f32.mrf.mxu0
      %v346 = vadd.f32 %v285, %v345
      %347 = vdwg.mxu0
      %348 = vmatpush.msra.mxu0 %v281
      %349 = vmatpush.msra.mxu0 %v279
      %350 = vmatpush.msra.mxu0 %v277
      %351 = vmatpush.msra.mxu0 %v275
      %352 = vmatpush.msra.mxu0 %v273
      %353 = vmatpush.msra.mxu0 %v271
      %354 = vmatpush.msra.mxu0 %v269
      %355 = vmatpush.msra.mxu0 %v267
      %356 = vmatpush.msra.mxu0 %v265
      %357 = vmatpush.msra.mxu0 %v263
      %358 = vmatpush.msra.mxu0 %v261
      %359 = vmatpush.msra.mxu0 %v259
      %360 = vmatpush.msra.mxu0 %v257
      %361 = vmatpush.msra.mxu0 %v255
      %362 = vmatpush.msra.mxu0 %v253
      %363 = vmatpush.msra.mxu0 %v251
      %364 = vmatmul.f32.gmra.mxu0 %v217
      %v365 = vpop.f32.mrf.mxu0
      %v366 = vadd.f32 %v346, %v365
      %367 = vdwg.mxu0
      %v368 = vld [vmem:[%s211] sm:$0xff]
      %v369 = vld [vmem:[%s211 + $0x8] sm:$0xff]
      %v370 = vmul.f32 %v326, %v368
      %v371 = vmul.f32 %v366, %v369
      %v372 = vadd.f32 %v370, %v371
      %373 = vadd.xlane.f32.xlu0 %v372
      %v374 = vpop.xlane.xlu0 %373
      %v375 = vld [vmem:[%s211 + $0x10] sm:$0xff]
      %v376 = vld [vmem:[%s211 + $0x18] sm:$0xff]
      %v377 = vmul.f32 %v326, %v375
      %v378 = vmul.f32 %v366, %v376
      %v379 = vadd.f32 %v377, %v378
      %380 = vadd.xlane.f32.xlu0 %v379
      %v381 = vpop.xlane.xlu0 %380
      %v382 = vld [vmem:[%s211 + $0x20] sm:$0xff]
      %v383 = vld [vmem:[%s211 + $0x28] sm:$0xff]
      %v384 = vmul.f32 %v326, %v382
      %v385 = vmul.f32 %v366, %v383
      %v386 = vadd.f32 %v384, %v385
      %387 = vadd.xlane.f32.xlu0 %v386
      %v388 = vpop.xlane.xlu0 %387
      %v389 = vmax.f32 %v374, %v381
      %v390 = vmax.f32 %v389, %v388
      %v391 = vsub.f32 %v374, %v390
      %v392 = vmul.f32 %v391, 1.442695
      %v393 = vpow.pop %v392
      %v394 = vsub.f32 %v381, %v390
      %v395 = vmul.f32 %v394, 1.442695
      %v396 = vpow.pop %v395
      %v397 = vsub.f32 %v388, %v390
      %v398 = vmul.f32 %v397, 1.442695
      %v399 = vpow.pop %v398
      %v400 = vadd.f32 %v393, %v396
      %v401 = vadd.f32 %v400, %v399
      %v402 = vrcp.pop %v401
      %v403 = vmul.f32 %v401, %v402
      %v404 = vsub.f32 1.0, %v403
      %v405 = vmul.f32 %v402, %v404
      %v406 = vadd.f32 %v402, %v405
      %vm407 = vweird.f32 %v401
      %vm408 = vweird.f32 %v402
      %vm409 = vmor %vm407, %vm408
      %v410 = vsel %vm409, %v402, %v406
      %v411 = vand.u32 2147483647, %v401
      %vm412 = vcmp.eq.f32.partialorder %v411, 8.507059e+37
      %v413 = vand.u32 %v401, 2147483648
      %v414 = vor.u32 1.1754944e-38, %v413
      %v415 = vsel %vm412, %v414, %v410
      %v416 = vlaneseq
      %v417 = vand.u32 %v416, 127
      %vm418 = vcmp.eq.s32.totalorder %v417, 0
      %v419 = vmul.f32 %v393, %v415
      %v420 = vsel %vm418, %v419, 0.0
      %vm421 = vcmp.eq.s32.totalorder %v417, 1
      %v422 = vmul.f32 %v396, %v415
      %v423 = vsel %vm421, %v422, %v420
      %vm424 = vcmp.eq.s32.totalorder %v417, 2
      %v425 = vmul.f32 %v399, %v415
      %v426 = vsel %vm424, %v425, %v423
      %vm427 = vcmask 64512
      %428 = vst.msk [vmem:[%s215] sm:$0xff] %vm427, %v426
      %p429 = scmp.lt.s32.totalorder %s15, 1
      %s430 = scalar_select %p429, %s15, 1
      %s431 = smul.addr %s430, 8
      %s432 = scalar_lea.vmem %s4, %s431
      // Predicated region
      $region37: #{entity_attention_fused.1} parent=35 // pred_check
        %p433 = pneg %p127
      $region38: #{entity_attention_fused.1} parent=35 // pred_check_branch
        %435 = sbr.rel (%p433) target = $region40
      $region39: #{entity_attention_fused.1} parent=35 // pred_region
        _
      $region40: #{entity_attention_fused.1} parent=35 // pred_fallthru
        _
    $region36: #{entity_attention_fused.1} parent=5 // pred_fallthru
      _
    %p436 = scmp.le.s32.totalorder 2, %s10
    // Predicated region
    $region41: #{entity_attention_fused.1} parent=5 // pred_check
      %p437 = pneg %p436
    $region42: #{entity_attention_fused.1} parent=5 // pred_check_branch
      %439 = sbr.rel (%p437) target = $region44
    $region43: #{entity_attention_fused.1} parent=5 // pred_region
      %s440 = ssub.s32 %s10, 2
      // Predicated region
      $region45: #{entity_attention_fused.1} parent=43 // pred_check
        %p441 = pneg %p133
      $region46: #{entity_attention_fused.1} parent=43 // pred_check_branch
        %443 = sbr.rel (%p441) target = $region48
      $region47: #{entity_attention_fused.1} parent=43 // pred_region
        %p444 = scmp.lt.s32.totalorder %s16, 1
        %s445 = scalar_select %p444, %s16, 1
        %s446 = smul.addr %s445, 8
        %s447 = scalar_lea.vmem %s4, %s446
      $region48: #{entity_attention_fused.1} parent=43 // pred_fallthru
        _
    $region44: #{entity_attention_fused.1} parent=5 // pred_fallthru
      _
  $region6: #{entity_attention_fused.1} parent=0 // loop_footer
    %s14 = sadd.s32 1, %s10
  $region7: #{entity_attention_fused.1} parent=0 // loop_footer_branch
    %9 = sbr.rel target = $region3
  $region8: #{entity_attention_fused.1} parent=0 // loop_exit
    _

</llo_original>
